<compile_context>
chip_gen: v7x
topology: tpu7x:2x2x1
jax: 0.10.0
libtpu: 0.0.40
codegen_flags: <defaults>
</compile_context>

<pallas_src>
import functools
import math

import jax
import jax.numpy as jnp
from jax import lax
from jax.experimental import pallas as pl
from jax.experimental.pallas import tpu as pltpu


def _patch_merging_kernel(x_ref, we_ref, wo_ref, bias_ref, o_ref, *, eps):
    """Fused 2x2 merge + LayerNorm(4C) + Linear(4C->2C) on one token tile.

    x_ref: (tr, 2, W2, 2C) — one contiguous slab of `tr` 2-row groups.
    Parity 0 carries [x0 | x2] per token, parity 1 carries [x1 | x3]; LN
    statistics over 4C are permutation-invariant, so they are accumulated
    across the two slabs, and the linear is two MXU calls against the even-/
    odd-row halves of the gamma-folded weight with f32 accumulation.

    NOTE: on a partial last grid block the padded rows may produce Inf/NaN in
    the LN path; rows are fully independent and OOB output writes are masked,
    so valid rows are unaffected.
    """
    tr, _, w2, c2 = x_ref.shape
    n = tr * w2

    x = x_ref[...]                               # single contiguous block load
    xe = x[:, 0].astype(jnp.float32)             # (tr, W2, 2C)  [x0 | x2]
    xo = x[:, 1].astype(jnp.float32)             # (tr, W2, 2C)  [x1 | x3]

    inv_c4 = 1.0 / (2 * c2)                      # 1 / (4*C)
    mean = (jnp.sum(xe, axis=-1, keepdims=True) +
            jnp.sum(xo, axis=-1, keepdims=True)) * inv_c4
    xe = xe - mean
    xo = xo - mean
    var = (jnp.sum(xe * xe, axis=-1, keepdims=True) +
           jnp.sum(xo * xo, axis=-1, keepdims=True)) * inv_c4  # biased, like torch LN
    rstd = lax.rsqrt(var + eps)                  # EUP

    # Normalize, cast to the MXU dtype, THEN collapse (tr, W2, 2C) -> (N, 2C)
    # so any relayout (W2 not a multiple of the sublane pack) is paid on the
    # narrow dtype.  gamma/beta are already folded into we/wo/bias.
    mm_dtype = we_ref.dtype
    xe = (xe * rstd).astype(mm_dtype).reshape(n, c2)
    xo = (xo * rstd).astype(mm_dtype).reshape(n, c2)

    y = jnp.dot(xe, we_ref[...], preferred_element_type=jnp.float32)
    y = y + jnp.dot(xo, wo_ref[...], preferred_element_type=jnp.float32)
    y = y + bias_ref[...]                        # (1, 2C_out) f32, broadcast
    o_ref[...] = y.astype(o_ref.dtype)


def prepare_patch_merging_params(gamma, beta, weight, *, weight_dtype=None):
    """One-time parameter prep (hoist out of the per-step forward path).

    gamma/beta: (4C,) LayerNorm affine; weight: (2C_out, 4C) nn.Linear weight
    (y = x @ weight.T, bias=False).  The LN affine is folded into the weight
    in f32, then the folded W^T rows are permuted/split to the kernel channel
    order [x0 | x2] (even image rows) / [x1 | x3] (odd image rows).  Pass
    weight_dtype=jnp.bfloat16 to run the MXU in bf16.
    """
    c4 = gamma.shape[0]
    assert c4 % 4 == 0
    c = c4 // 4
    wt = weight.T.astype(jnp.float32)            # (4C, 2C_out), transposed once
    gamma32 = gamma.astype(jnp.float32)
    beta32 = beta.astype(jnp.float32)
    w_fold = gamma32[:, None] * wt               # LN scale folded into W^T rows (f32)
    bias = beta32[None, :] @ wt                  # (1, 2C_out) constant LN-shift (f32)

    def split_even_odd(v):                       # torch channel groups: [x0, x1, x2, x3]
        even = jnp.concatenate([v[0 * c:1 * c], v[2 * c:3 * c]], axis=0)   # x0 | x2
        odd = jnp.concatenate([v[1 * c:2 * c], v[3 * c:4 * c]], axis=0)    # x1 | x3
        return even, odd

    w_e, w_o = split_even_odd(w_fold)
    mm_dtype = weight_dtype if weight_dtype is not None else weight.dtype
    return {
        "w_e": w_e.astype(mm_dtype),             # (2C, 2C_out)
        "w_o": w_o.astype(mm_dtype),             # (2C, 2C_out)
        "bias": bias,                            # (1, 2C_out) f32
    }


def _round_up(v, m):
    return ((v + m - 1) // m) * m


def _default_vmem_limit_bytes():
    """3/4 of per-core VMEM, capped at 96 MiB (~48 MiB on v7x, 96 MiB v5e/v6e)."""
    cap = 128 * 1024 * 1024
    try:
        cap = int(pltpu.get_tpu_info().vmem_capacity_bytes)
    except Exception:
        pass
    return min(3 * cap // 4, 96 * 1024 * 1024)


def patch_merging_forward(x, input_resolution, params, *, eps=1e-5,
                          block_tokens=2048, vmem_limit_bytes=None):
    """
    x:      (B, H*W, C)  (f32 or bf16; bf16 halves HBM traffic)
    params: output of prepare_patch_merging_params
    returns (B, H/2 * W/2, 2*C_out) in x.dtype
    """
    h, w = input_resolution
    b, seq_len, c = x.shape
    assert seq_len == h * w, "input feature has wrong size"
    assert h % 2 == 0 and w % 2 == 0, f"x size ({h}*{w}) are not even."
    h2, w2 = h // 2, w // 2
    r = b * h2                          # 2-row groups; each yields w2 output tokens
    c2 = 2 * c
    c2_out = params["w_e"].shape[-1]
    n_tok = r * w2

    # Free row-major reshape (no HBM copy): (B, H*W, C) -> (R, 2, W2, 2C).
    # Parity dim = even/odd image row; the 2C axis packs [even-col | odd-col].
    x6 = x.reshape(r, 2, w2, c2)

    itemsize_x = jnp.dtype(x.dtype).itemsize
    itemsize_w = jnp.dtype(params["w_e"].dtype).itemsize
    if vmem_limit_bytes is None:
        vmem_limit_bytes = _default_vmem_limit_bytes()

    # VMEM byte budget per output token: contiguous input block (2*2C elems
    # per token) + output, both double-buffered, plus ~4 live f32 full-tile
    # LN intermediates and the f32 matmul accumulator.
    per_token = (2 * c2 * itemsize_x * 2
                 + c2_out * itemsize_x * 2
                 + 4 * c2 * 4
                 + c2_out * 4)
    weight_bytes = 2 * c2 * c2_out * itemsize_w + 4 * c2_out
    budget = vmem_limit_bytes - weight_bytes - (4 << 20)      # compiler headroom
    max_tokens = max(budget // per_token, w2)
    block_tokens = int(min(block_tokens, max_tokens))

    # Dtype-aware sublane pack for the output tile (8 rows f32, 16 rows bf16)
    # so stores stay unmasked.
    pack = max(8, 32 // itemsize_x)
    align = pack // math.gcd(w2, pack)

    tr = max(1, block_tokens // w2)
    tr = max(align, (tr // align) * align)
    # Keep >= 4 grid steps when possible so both v7x TensorCores get work
    # (grid axis is "parallel"); harmless on v5e/v6e.
    tr_cap = _round_up(pl.cdiv(r, 4), align)
    tr = min(tr, tr_cap)
    if tr >= r:
        tr = r
    grid_r = pl.cdiv(r, tr)
    tok_blk = tr * w2

    kernel = functools.partial(_patch_merging_kernel, eps=eps)
    invariant = dict(pipeline_mode=pl.Buffered(1))            # loop-invariant operands

    cost = pl.CostEstimate(
        flops=2 * n_tok * (2 * c2) * c2_out + 8 * n_tok * (2 * c2),
        transcendentals=n_tok,
        bytes_accessed=(n_tok * 2 * c2 * itemsize_x
                        + n_tok * c2_out * itemsize_x
                        + 2 * c2 * c2_out * itemsize_w + 4 * c2_out),
    )

    out = pl.pallas_call(
        kernel,
        out_shape=jax.ShapeDtypeStruct((n_tok, c2_out), x.dtype),
        grid_spec=pltpu.PrefetchScalarGridSpec(
            num_scalar_prefetch=0,
            grid=(grid_r,),
            in_specs=[
                pl.BlockSpec((tr, 2, w2, c2), lambda i: (i, 0, 0, 0)),       # x slab (contiguous)
                pl.BlockSpec((c2, c2_out), lambda i: (0, 0), **invariant),   # gamma-folded W^T, even rows
                pl.BlockSpec((c2, c2_out), lambda i: (0, 0), **invariant),   # gamma-folded W^T, odd rows
                pl.BlockSpec((1, c2_out), lambda i: (0, 0), **invariant),    # beta @ W^T bias
            ],
            out_specs=pl.BlockSpec((tok_blk, c2_out), lambda i: (i, 0)),
        ),
        compiler_params=pltpu.CompilerParams(
            dimension_semantics=("parallel",),
            vmem_limit_bytes=int(vmem_limit_bytes)),
        cost_estimate=cost,
    )(x6, params["w_e"], params["w_o"], params["bias"])

    return out.reshape(b, h2 * w2, c2_out)


def _reference_forward(x, input_resolution, gamma, beta, weight, eps=1e-5):
    """Pure-JAX reference mirroring the PyTorch module, for verification."""
    h, w = input_resolution
    b, seq_len, c = x.shape
    xr = x.reshape(b, h, w, c)
    x0 = xr[:, 0::2, 0::2, :]
    x1 = xr[:, 1::2, 0::2, :]
    x2 = xr[:, 0::2, 1::2, :]
    x3 = xr[:, 1::2, 1::2, :]
    xm = jnp.concatenate([x0, x1, x2, x3], axis=-1).reshape(b, -1, 4 * c)
    mean = jnp.mean(xm, axis=-1, keepdims=True)
    var = jnp.mean((xm - mean) ** 2, axis=-1, keepdims=True)
    xn = (xm - mean) / jnp.sqrt(var + eps) * gamma + beta
    return xn @ weight.T


if __name__ == "__main__":
    key = jax.random.PRNGKey(0)
    k_x, k_w, k_g, k_b = jax.random.split(key, 4)

    # Small shapes consistent with the module: b=2, dim(C)=4, H=W=16 -> seq=256.
    B, H, W, C = 2, 16, 16, 4
    x = jax.random.normal(k_x, (B, H * W, C), dtype=jnp.float32)

    # Non-trivial LayerNorm affine so the gamma/beta fold is actually tested.
    gamma = 1.0 + 0.1 * jax.random.normal(k_g, (4 * C,), dtype=jnp.float32)
    beta = 0.1 * jax.random.normal(k_b, (4 * C,), dtype=jnp.float32)
    weight = jax.random.normal(k_w, (2 * C, 4 * C), dtype=jnp.float32) * 0.05

    ref = _reference_forward(x, (H, W), gamma, beta, weight)

    # f32 path: default tile, a tiny tile, and a tile leaving a masked partial
    # last block.
    params = prepare_patch_merging_params(gamma, beta, weight)
    for bt in (2048, 8, 24):
        out = patch_merging_forward(x, (H, W), params, block_tokens=bt)
        out = jax.block_until_ready(out)
        assert out.shape == (B, (H // 2) * (W // 2), 2 * C), out.shape
        assert jnp.allclose(out, ref, atol=1e-4, rtol=1e-4), f"mismatch (block_tokens={bt})"

    # bf16 path (activations + weights in bf16; LN stats / accumulation in f32).
    params_bf16 = prepare_patch_merging_params(gamma, beta, weight,
                                               weight_dtype=jnp.bfloat16)
    out_bf16 = patch_merging_forward(x.astype(jnp.bfloat16), (H, W), params_bf16)
    out_bf16 = jax.block_until_ready(out_bf16)
    assert out_bf16.dtype == jnp.bfloat16
    assert jnp.allclose(out_bf16.astype(jnp.float32), ref, atol=5e-2, rtol=5e-2), "bf16 mismatch"

    print("KERNEL_OK")
</pallas_src>

<mosaic_0001>
module attributes {stable_mosaic.version = 11 : i64} {
  func.func @_patch_merging_kernel(%arg0: i32, %arg1: memref<4x2x8x8xf32, #tpu.memory_space<vmem>>, %arg2: memref<8x8xf32, #tpu.memory_space<vmem>>, %arg3: memref<8x8xf32, #tpu.memory_space<vmem>>, %arg4: memref<1x8xf32, #tpu.memory_space<vmem>>, %arg5: memref<32x8xf32, #tpu.memory_space<vmem>>) attributes {dimension_semantics = [#tpu.dimension_semantics<parallel>], iteration_bounds = array<i64: 4>, scalar_prefetch = 0 : i64, scratch_operands = 0 : i64, tpu.core_type = #tpu.core_type<tc>, window_params = [{transform_indices = @transform_0, window_bounds = array<i64: 4, 2, 8, 8>}, {pipeline_mode = #tpu.pipeline_mode<synchronous>, transform_indices = @transform_1, window_bounds = array<i64: 8, 8>}, {pipeline_mode = #tpu.pipeline_mode<synchronous>, transform_indices = @transform_2, window_bounds = array<i64: 8, 8>}, {pipeline_mode = #tpu.pipeline_mode<synchronous>, transform_indices = @transform_3, window_bounds = array<i64: 1, 8>}, {transform_indices = @transform_4, window_bounds = array<i64: 32, 8>}]} {
    %c0 = arith.constant 0 : index
    %c0_0 = arith.constant 0 : index
    %c0_1 = arith.constant 0 : index
    %c0_2 = arith.constant 0 : index
    %0 = vector.load %arg1[%c0, %c0_0, %c0_1, %c0_2] : memref<4x2x8x8xf32, #tpu.memory_space<vmem>>, vector<4x2x8x8xf32>
    %1 = vector.extract_strided_slice %0 {offsets = [0, 0, 0, 0], sizes = [4, 1, 8, 8], strides = [1, 1, 1, 1]} : vector<4x2x8x8xf32> to vector<4x1x8x8xf32>
    %2 = vector.shape_cast %1 : vector<4x1x8x8xf32> to vector<4x8x8xf32>
    %3 = vector.extract_strided_slice %0 {offsets = [0, 1, 0, 0], sizes = [4, 1, 8, 8], strides = [1, 1, 1, 1]} : vector<4x2x8x8xf32> to vector<4x1x8x8xf32>
    %4 = vector.shape_cast %3 : vector<4x1x8x8xf32> to vector<4x8x8xf32>
    %cst = arith.constant dense<0.000000e+00> : vector<4x8xf32>
    %5 = vector.multi_reduction <add>, %2, %cst [2] : vector<4x8x8xf32> to vector<4x8xf32>
    %6 = vector.shape_cast %5 : vector<4x8xf32> to vector<4x8x1xf32>
    %cst_3 = arith.constant dense<0.000000e+00> : vector<4x8xf32>
    %7 = vector.multi_reduction <add>, %4, %cst_3 [2] : vector<4x8x8xf32> to vector<4x8xf32>
    %8 = vector.shape_cast %7 : vector<4x8xf32> to vector<4x8x1xf32>
    %9 = arith.addf %6, %8 : vector<4x8x1xf32>
    %cst_4 = arith.constant 6.250000e-02 : f32
    %10 = vector.broadcast %cst_4 : f32 to vector<4x8x1xf32>
    %11 = arith.mulf %9, %10 : vector<4x8x1xf32>
    %12 = vector.broadcast %11 : vector<4x8x1xf32> to vector<4x8x8xf32>
    %13 = arith.subf %2, %12 : vector<4x8x8xf32>
    %14 = vector.broadcast %11 : vector<4x8x1xf32> to vector<4x8x8xf32>
    %15 = arith.subf %4, %14 : vector<4x8x8xf32>
    %16 = arith.mulf %13, %13 : vector<4x8x8xf32>
    %cst_5 = arith.constant dense<0.000000e+00> : vector<4x8xf32>
    %17 = vector.multi_reduction <add>, %16, %cst_5 [2] : vector<4x8x8xf32> to vector<4x8xf32>
    %18 = vector.shape_cast %17 : vector<4x8xf32> to vector<4x8x1xf32>
    %19 = arith.mulf %15, %15 : vector<4x8x8xf32>
    %cst_6 = arith.constant dense<0.000000e+00> : vector<4x8xf32>
    %20 = vector.multi_reduction <add>, %19, %cst_6 [2] : vector<4x8x8xf32> to vector<4x8xf32>
    %21 = vector.shape_cast %20 : vector<4x8xf32> to vector<4x8x1xf32>
    %22 = arith.addf %18, %21 : vector<4x8x1xf32>
    %cst_7 = arith.constant 6.250000e-02 : f32
    %23 = vector.broadcast %cst_7 : f32 to vector<4x8x1xf32>
    %24 = arith.mulf %22, %23 : vector<4x8x1xf32>
    %cst_8 = arith.constant 9.99999974E-6 : f32
    %25 = vector.broadcast %cst_8 : f32 to vector<4x8x1xf32>
    %26 = arith.addf %24, %25 : vector<4x8x1xf32>
    %27 = math.rsqrt %26 : vector<4x8x1xf32>
    %28 = vector.broadcast %27 : vector<4x8x1xf32> to vector<4x8x8xf32>
    %29 = arith.mulf %13, %28 : vector<4x8x8xf32>
    %30 = vector.shape_cast %29 : vector<4x8x8xf32> to vector<32x8xf32>
    %31 = vector.broadcast %27 : vector<4x8x1xf32> to vector<4x8x8xf32>
    %32 = arith.mulf %15, %31 : vector<4x8x8xf32>
    %33 = vector.shape_cast %32 : vector<4x8x8xf32> to vector<32x8xf32>
    %c0_9 = arith.constant 0 : index
    %c0_10 = arith.constant 0 : index
    %34 = vector.load %arg2[%c0_9, %c0_10] : memref<8x8xf32, #tpu.memory_space<vmem>>, vector<8x8xf32>
    %cst_11 = arith.constant dense<0.000000e+00> : vector<32x8xf32>
    %35 = tpu.matmul %30, %34, %cst_11 {dimension_numbers = #tpu.dot_dimension_numbers<[1], [0], [0], [1], [0, 0, 1, 1], [], []>} : vector<32x8xf32>, vector<8x8xf32>, vector<32x8xf32> -> vector<32x8xf32>
    %c0_12 = arith.constant 0 : index
    %c0_13 = arith.constant 0 : index
    %36 = vector.load %arg3[%c0_12, %c0_13] : memref<8x8xf32, #tpu.memory_space<vmem>>, vector<8x8xf32>
    %cst_14 = arith.constant dense<0.000000e+00> : vector<32x8xf32>
    %37 = tpu.matmul %33, %36, %cst_14 {dimension_numbers = #tpu.dot_dimension_numbers<[1], [0], [0], [1], [0, 0, 1, 1], [], []>} : vector<32x8xf32>, vector<8x8xf32>, vector<32x8xf32> -> vector<32x8xf32>
    %38 = arith.addf %35, %37 : vector<32x8xf32>
    %c0_15 = arith.constant 0 : index
    %c0_16 = arith.constant 0 : index
    %39 = vector.load %arg4[%c0_15, %c0_16] : memref<1x8xf32, #tpu.memory_space<vmem>>, vector<1x8xf32>
    %40 = vector.broadcast %39 : vector<1x8xf32> to vector<32x8xf32>
    %41 = arith.addf %38, %40 : vector<32x8xf32>
    %c0_17 = arith.constant 0 : index
    %c0_18 = arith.constant 0 : index
    %42 = vector.load %arg5[%c0_17, %c0_18] : memref<32x8xf32, #tpu.memory_space<vmem>>, vector<32x8xf32>
    tpu.vector_store %arg5[%c0_17, %c0_18], %41 {strides = array<i32>} : memref<32x8xf32, #tpu.memory_space<vmem>>, vector<32x8xf32>,
    return
  }
  func.func @transform_0(%arg0: i32) -> (i32, i32, i32, i32) {
    %c0_i32 = arith.constant 0 : i32
    %c0_i32_0 = arith.constant 0 : i32
    %c0_i32_1 = arith.constant 0 : i32
    %c0_i32_2 = arith.constant 0 : i32
    return %arg0, %c0_i32, %c0_i32_0, %c0_i32_1 : i32, i32, i32, i32
  }
  func.func @transform_1(%arg0: i32) -> (i32, i32) {
    %c0_i32 = arith.constant 0 : i32
    %c0_i32_0 = arith.constant 0 : i32
    %c0_i32_1 = arith.constant 0 : i32
    return %c0_i32, %c0_i32_0 : i32, i32
  }
  func.func @transform_2(%arg0: i32) -> (i32, i32) {
    %c0_i32 = arith.constant 0 : i32
    %c0_i32_0 = arith.constant 0 : i32
    %c0_i32_1 = arith.constant 0 : i32
    return %c0_i32, %c0_i32_0 : i32, i32
  }
  func.func @transform_3(%arg0: i32) -> (i32, i32) {
    %c0_i32 = arith.constant 0 : i32
    %c0_i32_0 = arith.constant 0 : i32
    %c0_i32_1 = arith.constant 0 : i32
    return %c0_i32, %c0_i32_0 : i32, i32
  }
  func.func @transform_4(%arg0: i32) -> (i32, i32) {
    %c0_i32 = arith.constant 0 : i32
    %c0_i32_0 = arith.constant 0 : i32
    return %arg0, %c0_i32 : i32, i32
  }
}

</mosaic_0001>

<llo_original>
// kernel: tpu_custom_call.1
$region0: #{tpu_custom_call.1}
  #allocation0 [shape = 'u32[]', space=smem, size = 0x4, offset = 0x4, fixed_abs, tag = 'smem constant byte address 0x4 - core index']
  #allocation1 [shape = 'u32[144,128]{1,0:T(1,128)}', space=vmem, size = 0x12000, scoped, tag = 'internal scratch']
  %s0 = inlined_call_operand.hbm [shape: f32[16,2,8,8], index: 0, kind: input, shape index: {}]
  %s1 = inlined_call_operand.hbm [shape: f32[8,8], index: 1, kind: input, shape index: {}]
  %s2 = inlined_call_operand.hbm [shape: f32[8,8], index: 2, kind: input, shape index: {}]
  %s3 = inlined_call_operand.hbm [shape: f32[1,8], index: 3, kind: input, shape index: {}]
  %s4 = inlined_call_operand.hbm [shape: f32[128,8], index: 4, kind: output, shape index: {}]
  %s5 = sld [smem:[#allocation0]]
  $region65: #{tpu_custom_call.1} parent=0
    _
  %s7 = ssub.s32 1, %s5
  %s8 = scalar_select 0, %s7, %s5
  $region1: #{tpu_custom_call.1} parent=0
    #allocation2 [shape = 'u8[65536]{0}', space=vmem, size = 0x10000, scoped, tag = 'input window, operand 0']
    #allocation3 [shape = 's32[2]{0}', space=sflag, size = 0x8, scoped, tag = 'scoped memory for tpu_custom_call.1']
    #allocation4 [shape = 's32[2]{0}', space=sflag, size = 0x8, scoped, tag = 'scoped memory for tpu_custom_call.1']
    #allocation5 [shape = 'u8[4096]{0}', space=vmem, size = 0x1000, scoped, tag = 'input window, operand 1, single buffered']
    #allocation6 [shape = 's32[1]{0}', space=sflag, size = 0x4, scoped, tag = 'scoped memory for tpu_custom_call.1']
    #allocation7 [shape = 'u8[4096]{0}', space=vmem, size = 0x1000, scoped, tag = 'input window, operand 2, single buffered']
    #allocation8 [shape = 'u8[512]{0}', space=vmem, size = 0x400, scoped, tag = 'input window, operand 3, single buffered']
    #allocation9 [shape = 's32[1]{0}', space=sflag, size = 0x4, scoped, tag = 'scoped memory for tpu_custom_call.1']
    #allocation10 [shape = 'u8[32768]{0}', space=vmem, size = 0x8000, scoped, tag = 'output window, operand 0']
    %9 = vsyncpa [#allocation3], 0
    %s10 = scalar_lea.sflag [#allocation3], 1
    %11 = vsyncpa %s10, 0
    %12 = vsyncpa [#allocation6], 0
    %13 = vsyncpa [#allocation9], 0
    %14 = vsyncpa [#allocation4], 0
    %s15 = scalar_lea.sflag [#allocation4], 1
    %16 = vsyncpa %s15, 0
    loop: start=0, step=1, limit=6
    $region2: #{tpu_custom_call.1} parent=1 // loop_pre_header
      _
    $region3: #{tpu_custom_call.1} parent=1 // loop_header
      %s18 = sphi 0, %s22
      %p19 = scmp.ge.s32.totalorder %s18, 6
      %s28 = sphi 0, %s30
      %s31 = sphi 0, %s28
      %s32 = sphi 0, %s31
      %s48 = sphi 0, %s32
      %s52 = sphi 0, %s52
      %s54 = sphi 0, %s52
      %s55 = sphi 0, %s54
      %s69 = sphi 0, %s55
      %s73 = sphi 0, %s73
      %s75 = sphi 0, %s73
      %s76 = sphi 0, %s75
      %s90 = sphi 0, %s76
      %s94 = sphi 0, %s94
      %s96 = sphi 0, %s94
      %s97 = sphi 0, %s96
      %s111 = sphi 0, %s97
      %s117 = sphi 0, %s119
      %s120 = sphi 0, %s117
      %s121 = sphi 0, %s120
      %s137 = sphi 0, %s121
    $region4: #{tpu_custom_call.1} parent=1 // loop_header_branch
      %21 = sbr.rel (%p19) target = $region8
    $region5: #{tpu_custom_call.1} parent=1 // loop_body
      %s23 = ssub.s32 %s18, 1
      %s24 = ssub.s32 %s18, 2
      %s25 = sadd.s32 %s18, 1
      %s26 = ssub.s32 %s18, %s25
      %p27 = scmp.eq.s32.totalorder %s26, 0
      %s29 = sadd.s32 %s28, 1
      %s30 = scalar_select %p27, %s28, %s29
      %p33 = pneg %p27
      %p34 = scmp.eq.s32.totalorder %s18, 3
      %p35 = por %p33, %p34
      %p36 = scmp.ne.s32.totalorder %s28, %s31
      %p37 = scmp.eq.s32.totalorder %s18, 0
      %p38 = por %p36, %p37
      %p39 = scmp.ne.s32.totalorder %s28, %s31
      %p40 = scmp.eq.s32.totalorder %s23, 3
      %p41 = por %p39, %p40
      %p42 = scmp.ne.s32.totalorder %s31, %s32
      %p43 = scmp.eq.s32.totalorder %s23, 0
      %p44 = por %p42, %p43
      %p45 = scmp.ne.s32.totalorder %s31, %s32
      %p46 = scmp.eq.s32.totalorder %s24, 3
      %p47 = por %p45, %p46
      %p49 = scmp.ne.s32.totalorder %s32, %s48
      %p50 = scmp.eq.s32.totalorder %s24, 0
      %p51 = por %p49, %p50
      %s53 = sadd.s32 %s52, 1
      %p56 = scmp.eq.s32.totalorder %s18, 3
      %p57 = scmp.ne.s32.totalorder %s52, %s54
      %p58 = scmp.eq.s32.totalorder %s18, 0
      %p59 = por %p57, %p58
      %p60 = scmp.ne.s32.totalorder %s52, %s54
      %p61 = scmp.eq.s32.totalorder %s23, 3
      %p62 = por %p60, %p61
      %p63 = scmp.ne.s32.totalorder %s54, %s55
      %p64 = scmp.eq.s32.totalorder %s23, 0
      %p65 = por %p63, %p64
      %p66 = scmp.ne.s32.totalorder %s54, %s55
      %p67 = scmp.eq.s32.totalorder %s24, 3
      %p68 = por %p66, %p67
      %p70 = scmp.ne.s32.totalorder %s55, %s69
      %p71 = scmp.eq.s32.totalorder %s24, 0
      %p72 = por %p70, %p71
      %s74 = sadd.s32 %s73, 1
      %p77 = scmp.eq.s32.totalorder %s18, 3
      %p78 = scmp.ne.s32.totalorder %s73, %s75
      %p79 = scmp.eq.s32.totalorder %s18, 0
      %p80 = por %p78, %p79
      %p81 = scmp.ne.s32.totalorder %s73, %s75
      %p82 = scmp.eq.s32.totalorder %s23, 3
      %p83 = por %p81, %p82
      %p84 = scmp.ne.s32.totalorder %s75, %s76
      %p85 = scmp.eq.s32.totalorder %s23, 0
      %p86 = por %p84, %p85
      %p87 = scmp.ne.s32.totalorder %s75, %s76
      %p88 = scmp.eq.s32.totalorder %s24, 3
      %p89 = por %p87, %p88
      %p91 = scmp.ne.s32.totalorder %s76, %s90
      %p92 = scmp.eq.s32.totalorder %s24, 0
      %p93 = por %p91, %p92
      %s95 = sadd.s32 %s94, 1
      %p98 = scmp.eq.s32.totalorder %s18, 3
      %p99 = scmp.ne.s32.totalorder %s94, %s96
      %p100 = scmp.eq.s32.totalorder %s18, 0
      %p101 = por %p99, %p100
      %p102 = scmp.ne.s32.totalorder %s94, %s96
      %p103 = scmp.eq.s32.totalorder %s23, 3
      %p104 = por %p102, %p103
      %p105 = scmp.ne.s32.totalorder %s96, %s97
      %p106 = scmp.eq.s32.totalorder %s23, 0
      %p107 = por %p105, %p106
      %p108 = scmp.ne.s32.totalorder %s96, %s97
      %p109 = scmp.eq.s32.totalorder %s24, 3
      %p110 = por %p108, %p109
      %p112 = scmp.ne.s32.totalorder %s97, %s111
      %p113 = scmp.eq.s32.totalorder %s24, 0
      %p114 = por %p112, %p113
      %s115 = ssub.s32 %s18, %s25
      %p116 = scmp.eq.s32.totalorder %s115, 0
      %s118 = sadd.s32 %s117, 1
      %s119 = scalar_select %p116, %s117, %s118
      %p122 = pneg %p116
      %p123 = scmp.eq.s32.totalorder %s18, 3
      %p124 = por %p122, %p123
      %p125 = scmp.ne.s32.totalorder %s117, %s120
      %p126 = scmp.eq.s32.totalorder %s18, 0
      %p127 = por %p125, %p126
      %p128 = scmp.ne.s32.totalorder %s117, %s120
      %p129 = scmp.eq.s32.totalorder %s23, 3
      %p130 = por %p128, %p129
      %p131 = scmp.ne.s32.totalorder %s120, %s121
      %p132 = scmp.eq.s32.totalorder %s23, 0
      %p133 = por %p131, %p132
      %p134 = scmp.ne.s32.totalorder %s120, %s121
      %p135 = scmp.eq.s32.totalorder %s24, 3
      %p136 = por %p134, %p135
      %p138 = scmp.ne.s32.totalorder %s121, %s137
      %p139 = scmp.eq.s32.totalorder %s24, 0
      %p140 = por %p138, %p139
      %p141 = scmp.le.s32.totalorder 1, %s18
      %p142 = scmp.lt.s32.totalorder %s18, 5
      %p143 = pnand %p141, %p142
      %p144 = pneg %p143
      // Predicated region
      $region9: #{tpu_custom_call.1} parent=5 // pred_check
        _
      $region10: #{tpu_custom_call.1} parent=5 // pred_check_branch
        %146 = sbr.rel (%p143) target = $region12
      $region11: #{tpu_custom_call.1} parent=5 // pred_region
        %s147 = ssub.s32 %s18, 1
        // Predicated region
        $region13: #{tpu_custom_call.1} parent=11 // pred_check
          %p148 = pneg %p65
        $region14: #{tpu_custom_call.1} parent=11 // pred_check_branch
          %150 = sbr.rel (%p148) target = $region16
        $region15: #{tpu_custom_call.1} parent=11 // pred_region
          %s152 = ssub.s32 128, 128
          %153 = vsyncadd [#allocation6], %s152
          %s155 = sshll.u32 [#allocation5], 4
          %s156 = int_to_ptr.vmem [resolvable:$true] %s155
          %158 = dma.hbm_to_vmem [thread:$0]  %s1, 128, %s156, [#allocation6]
        $region16: #{tpu_custom_call.1} parent=11 // pred_fallthru
          _
        // Predicated region
        $region17: #{tpu_custom_call.1} parent=11 // pred_check
          %p159 = pneg %p86
        $region18: #{tpu_custom_call.1} parent=11 // pred_check_branch
          %161 = sbr.rel (%p159) target = $region20
        $region19: #{tpu_custom_call.1} parent=11 // pred_region
          %s163 = ssub.s32 128, 128
          %164 = vsyncadd [#allocation6], %s163
          %s166 = sshll.u32 [#allocation7], 4
          %s167 = int_to_ptr.vmem [resolvable:$true] %s166
          %169 = dma.hbm_to_vmem [thread:$0]  %s2, 128, %s167, [#allocation6]
        $region20: #{tpu_custom_call.1} parent=11 // pred_fallthru
          _
        // Predicated region
        $region21: #{tpu_custom_call.1} parent=11 // pred_check
          %p170 = pneg %p107
        $region22: #{tpu_custom_call.1} parent=11 // pred_check_branch
          %172 = sbr.rel (%p170) target = $region24
        $region23: #{tpu_custom_call.1} parent=11 // pred_region
          %s174 = ssub.s32 16, 16
          %175 = vsyncadd [#allocation9], %s174
          %s177 = sshll.u32 [#allocation8], 4
          %s178 = int_to_ptr.vmem [resolvable:$true] %s177
          %180 = dma.hbm_to_vmem [thread:$0]  %s3, 16, %s178, [#allocation9]
        $region24: #{tpu_custom_call.1} parent=11 // pred_fallthru
          _
      $region12: #{tpu_custom_call.1} parent=5 // pred_fallthru
        _
      %p181 = scmp.lt.s32.totalorder %s18, 4
      // Predicated region
      $region25: #{tpu_custom_call.1} parent=5 // pred_check
        %p182 = pneg %p181
      $region26: #{tpu_custom_call.1} parent=5 // pred_check_branch
        %184 = sbr.rel (%p182) target = $region28
      $region27: #{tpu_custom_call.1} parent=5 // pred_region
        // Predicated region
        $region29: #{tpu_custom_call.1} parent=27 // pred_check
          %p185 = pneg %p38
        $region30: #{tpu_custom_call.1} parent=27 // pred_check_branch
          %187 = sbr.rel (%p185) target = $region32
        $region31: #{tpu_custom_call.1} parent=27 // pred_region
          %s188 = sand.u32 %s28, 1
          %s189 = scalar_lea.sflag [#allocation3], %s188
          %s190 = sand.u32 %s28, 1
          %s191 = smul.addr %s190, 64
          %s192 = scalar_lea.vmem [#allocation2], %s191
          %s193 = smul.u32 4, %s18
          %s195 = ssub.s32 1024, 1024
          %196 = vsyncadd %s189, %s195
          %s197 = smul.addr %s193, 2
          %s198 = smul.addr %s197, 128
          %s199 = scalar_lea.hbm %s0, %s198
          %s200 = sshll.u32 %s192, 4
          %s201 = int_to_ptr.vmem [resolvable:$true] %s200
          %206 = dma.hbm_to_vmem [thread:$0]  %s199, 1024, %s201, %s189, 128, 128, 8
        $region32: #{tpu_custom_call.1} parent=27 // pred_fallthru
          _
      $region28: #{tpu_custom_call.1} parent=5 // pred_fallthru
        _
      %p207 = scmp.le.s32.totalorder 1, %s18
      %p208 = scmp.lt.s32.totalorder %s18, 5
      %p209 = pnand %p207, %p208
      %p210 = pneg %p209
      // Predicated region
      $region33: #{tpu_custom_call.1} parent=5 // pred_check
        _
      $region34: #{tpu_custom_call.1} parent=5 // pred_check_branch
        %212 = sbr.rel (%p209) target = $region36
      $region35: #{tpu_custom_call.1} parent=5 // pred_region
        %s213 = ssub.s32 %s18, 1
        %s214 = sand.u32 %s31, 1
        %s215 = scalar_lea.sflag [#allocation3], %s214
        %s216 = sand.u32 %s31, 1
        %s217 = smul.addr %s216, 64
        %s218 = scalar_lea.vmem [#allocation2], %s217
        // Predicated region
        $region37: #{tpu_custom_call.1} parent=35 // pred_check
          %p219 = pneg %p44
        $region38: #{tpu_custom_call.1} parent=35 // pred_check_branch
          %221 = sbr.rel (%p219) target = $region40
        $region39: #{tpu_custom_call.1} parent=35 // pred_region
          %222 = dma.done %s215, 1024
        $region40: #{tpu_custom_call.1} parent=35 // pred_fallthru
          _
        // Predicated region
        $region41: #{tpu_custom_call.1} parent=35 // pred_check
          %p223 = pneg %p65
        $region42: #{tpu_custom_call.1} parent=35 // pred_check_branch
          %225 = sbr.rel (%p223) target = $region44
        $region43: #{tpu_custom_call.1} parent=35 // pred_region
          %226 = dma.done [#allocation6], 128
        $region44: #{tpu_custom_call.1} parent=35 // pred_fallthru
          _
        // Predicated region
        $region45: #{tpu_custom_call.1} parent=35 // pred_check
          %p227 = pneg %p86
        $region46: #{tpu_custom_call.1} parent=35 // pred_check_branch
          %229 = sbr.rel (%p227) target = $region48
        $region47: #{tpu_custom_call.1} parent=35 // pred_region
          %230 = dma.done [#allocation6], 128
        $region48: #{tpu_custom_call.1} parent=35 // pred_fallthru
          _
        // Predicated region
        $region49: #{tpu_custom_call.1} parent=35 // pred_check
          %p231 = pneg %p107
        $region50: #{tpu_custom_call.1} parent=35 // pred_check_branch
          %233 = sbr.rel (%p231) target = $region52
        $region51: #{tpu_custom_call.1} parent=35 // pred_region
          %234 = dma.done [#allocation9], 16
        $region52: #{tpu_custom_call.1} parent=35 // pred_fallthru
          _
        %s235 = sand.u32 %s31, 1
        %s236 = scalar_lea.sflag [#allocation3], %s235
        %s237 = sand.u32 %s31, 1
        %s238 = smul.addr %s237, 64
        %s239 = scalar_lea.vmem [#allocation2], %s238
        %p240 = pneg %p44
        %p241 = pneg %p41
        %p242 = pneg %p65
        %p243 = pneg %p62
        %p244 = pneg %p86
        %p245 = pneg %p83
        %p246 = pneg %p107
        %p247 = pneg %p104
        %p248 = pneg %p133
        %p249 = pneg %p130
        %s250 = sand.u32 %s120, 1
        %s251 = scalar_lea.sflag [#allocation4], %s250
        %s252 = sand.u32 %s120, 1
        %s253 = smul.addr %s252, 32
        %s254 = scalar_lea.vmem [#allocation10], %s253
        %s255 = smul.u32 4, %s23
        %s256 = smul.u32 4, %s23
        %v257 = vld [vmem:[%s218] sm:$0xff]
        %v258 = vld [vmem:[%s218 + $0x8] sm:$0xff]
        %v259 = vld [vmem:[%s218 + $0x10] sm:$0xff]
        %v260 = vld [vmem:[%s218 + $0x18] sm:$0xff]
        %v261 = vld [vmem:[%s218 + $0x20] sm:$0xff]
        %v262 = vld [vmem:[%s218 + $0x28] sm:$0xff]
        %v263 = vld [vmem:[%s218 + $0x30] sm:$0xff]
        %v264 = vld [vmem:[%s218 + $0x38] sm:$0xff]
        %vm265 = vcmask 64512
        %v266 = vsel %vm265, %v257, 0.0
        %267 = vadd.xlane.f32.xlu0 %v266
        %v268 = vpop.xlane.xlu0 %267
        %v269 = vsel %vm265, %v259, 0.0
        %270 = vadd.xlane.f32.xlu0 %v269
        %v271 = vpop.xlane.xlu0 %270
        %v272 = vsel %vm265, %v261, 0.0
        %273 = vadd.xlane.f32.xlu0 %v272
        %v274 = vpop.xlane.xlu0 %273
        %v275 = vsel %vm265, %v263, 0.0
        %276 = vadd.xlane.f32.xlu0 %v275
        %v277 = vpop.xlane.xlu0 %276
        %v278 = vsel %vm265, %v258, 0.0
        %279 = vadd.xlane.f32.xlu0 %v278
        %v280 = vpop.xlane.xlu0 %279
        %v281 = vsel %vm265, %v260, 0.0
        %282 = vadd.xlane.f32.xlu0 %v281
        %v283 = vpop.xlane.xlu0 %282
        %v284 = vsel %vm265, %v262, 0.0
        %285 = vadd.xlane.f32.xlu0 %v284
        %v286 = vpop.xlane.xlu0 %285
        %v287 = vsel %vm265, %v264, 0.0
        %288 = vadd.xlane.f32.xlu0 %v287
        %v289 = vpop.xlane.xlu0 %288
        %v290 = vadd.f32 %v268, %v280
        %v291 = vadd.f32 %v271, %v283
        %v292 = vadd.f32 %v274, %v286
        %v293 = vadd.f32 %v277, %v289
        %v294 = vmul.f32 %v290, 0.0625
        %v295 = vmul.f32 %v291, 0.0625
        %v296 = vmul.f32 %v292, 0.0625
        %v297 = vmul.f32 %v293, 0.0625
        %v298 = vsub.f32 %v257, %v294
        %v299 = vsub.f32 %v259, %v295
        %v300 = vsub.f32 %v261, %v296
        %v301 = vsub.f32 %v263, %v297
        %v302 = vsub.f32 %v258, %v294
        %v303 = vsub.f32 %v260, %v295
        %v304 = vsub.f32 %v262, %v296
        %v305 = vsub.f32 %v264, %v297
        %v306 = vmul.f32 %v298, %v298
        %v307 = vmul.f32 %v299, %v299
        %v308 = vmul.f32 %v300, %v300
        %v309 = vmul.f32 %v301, %v301
        %v310 = vsel %vm265, %v306, 0.0
        %311 = vadd.xlane.f32.xlu0 %v310
        %v312 = vpop.xlane.xlu0 %311
        %v313 = vsel %vm265, %v307, 0.0
        %314 = vadd.xlane.f32.xlu0 %v313
        %v315 = vpop.xlane.xlu0 %314
        %v316 = vsel %vm265, %v308, 0.0
        %317 = vadd.xlane.f32.xlu0 %v316
        %v318 = vpop.xlane.xlu0 %317
        %v319 = vsel %vm265, %v309, 0.0
        %320 = vadd.xlane.f32.xlu0 %v319
        %v321 = vpop.xlane.xlu0 %320
        %v322 = vmul.f32 %v302, %v302
        %v323 = vmul.f32 %v303, %v303
        %v324 = vmul.f32 %v304, %v304
        %v325 = vmul.f32 %v305, %v305
        %v326 = vsel %vm265, %v322, 0.0
        %327 = vadd.xlane.f32.xlu0 %v326
        %v328 = vpop.xlane.xlu0 %327
        %v329 = vsel %vm265, %v323, 0.0
        %330 = vadd.xlane.f32.xlu0 %v329
        %v331 = vpop.xlane.xlu0 %330
        %v332 = vsel %vm265, %v324, 0.0
        %333 = vadd.xlane.f32.xlu0 %v332
        %v334 = vpop.xlane.xlu0 %333
        %v335 = vsel %vm265, %v325, 0.0
        %336 = vadd.xlane.f32.xlu0 %v335
        %v337 = vpop.xlane.xlu0 %336
        %v338 = vadd.f32 %v312, %v328
        %v339 = vadd.f32 %v315, %v331
        %v340 = vadd.f32 %v318, %v334
        %v341 = vadd.f32 %v321, %v337
        %v342 = vmul.f32 %v338, 0.0625
        %v343 = vmul.f32 %v339, 0.0625
        %v344 = vmul.f32 %v340, 0.0625
        %v345 = vmul.f32 %v341, 0.0625
        %v346 = vadd.f32 %v342, 1e-05
        %v347 = vadd.f32 %v343, 1e-05
        %v348 = vadd.f32 %v344, 1e-05
        %v349 = vadd.f32 %v345, 1e-05
        %v350 = vrsqrt.pop %v346
        %v351 = vrsqrt.pop %v347
        %v352 = vrsqrt.pop %v348
        %v353 = vrsqrt.pop %v349
        %v354 = vmul.f32 %v298, %v350
        %v355 = vmul.f32 %v299, %v351
        %v356 = vmul.f32 %v300, %v352
        %v357 = vmul.f32 %v301, %v353
        %v358 = vmul.f32 %v302, %v350
        %v359 = vmul.f32 %v303, %v351
        %v360 = vmul.f32 %v304, %v352
        %v361 = vmul.f32 %v305, %v353
        %v362 = vld [vmem:[#allocation5] sm:$0xff]
        %v363 = vld [vmem:[#allocation7] sm:$0xff]
        %v365 = vsel %vm265, %v358, 0
        %v368 = vsel %vm265, %v359, 0
        %v371 = vsel %vm265, %v360, 0
        %v374 = vsel %vm265, %v361, 0
        %376 = vmatprep.subr.mxu0 0.0
        %377 = vmatpush1.msra.mxu0 %v363
        %378 = vmatprep.subr.mxu0 0.0
        %379 = vmatpush1.msra.mxu0 0.0
        %380 = vmatprep.subr.mxu0 0.0
        %381 = vmatpush1.msra.mxu0 0.0
        %382 = vmatprep.subr.mxu0 0.0
        %383 = vmatpush1.msra.mxu0 0.0
        %384 = vmatprep.subr.mxu0 0.0
        %385 = vmatpush1.msra.mxu0 0.0
        %386 = vmatprep.subr.mxu0 0.0
        %387 = vmatpush1.msra.mxu0 0.0
        %388 = vmatprep.subr.mxu0 0.0
        %389 = vmatpush1.msra.mxu0 0.0
        %390 = vmatprep.subr.mxu0 0.0
        %391 = vmatpush1.msra.mxu0 0.0
        %392 = vmatprep.subr.mxu0 0.0
        %393 = vmatpush1.msra.mxu0 0.0
        %394 = vmatprep.subr.mxu0 0.0
        %395 = vmatpush1.msra.mxu0 0.0
        %396 = vmatprep.subr.mxu0 0.0
        %397 = vmatpush1.msra.mxu0 0.0
        %398 = vmatprep.subr.mxu0 0.0
        %399 = vmatpush1.msra.mxu0 0.0
        %400 = vmatprep.subr.mxu0 0.0
        %401 = vmatpush1.msra.mxu0 0.0
        %402 = vmatprep.subr.mxu0 0.0
        %403 = vmatpush1.msra.mxu0 0.0
        %404 = vmatprep.subr.mxu0 0.0
        %405 = vmatpush1.msra.mxu0 0.0
        %406 = vmatprep.subr.mxu0 0.0
        %407 = vmatpush1.msra.mxu0 0.0
        %408 = vmatprep.subr.mxu0 0.0
        %409 = vmatpush1.msra.mxu0 0.0
        %410 = vmatprep.subr.mxu0 0.0
        %411 = vmatpush1.msra.mxu0 0.0
        %412 = vmatprep.subr.mxu0 0.0
        %413 = vmatpush1.msra.mxu0 0.0
        %414 = vmatprep.subr.mxu0 0.0
        %415 = vmatpush1.msra.mxu0 0.0
        %416 = vmatprep.subr.mxu0 0.0
        %417 = vmatpush1.msra.mxu0 0.0
        %418 = vmatprep.subr.mxu0 0.0
        %419 = vmatpush1.msra.mxu0 0.0
        %420 = vmatprep.subr.mxu0 0.0
        %421 = vmatpush1.msra.mxu0 0.0
        %422 = vmatprep.subr.mxu0 0.0
        %423 = vmatpush1.msra.mxu0 0.0
        %424 = vmatprep.subr.mxu0 0.0
        %425 = vmatpush1.msra.mxu0 0.0
        %426 = vmatprep.subr.mxu0 0.0
        %427 = vmatpush1.msra.mxu0 0.0
        %428 = vmatprep.subr.mxu0 0.0
        %429 = vmatpush1.msra.mxu0 0.0
        %430 = vmatprep.subr.mxu0 0.0
        %431 = vmatpush1.msra.mxu0 0.0
        %432 = vmatprep.subr.mxu0 0.0
        %433 = vmatpush1.msra.mxu0 0.0
        %434 = vmatprep.subr.mxu0 0.0
        %435 = vmatpush1.msra.mxu0 0.0
        %436 = vmatprep.subr.mxu0 0.0
        %437 = vmatpush1.msra.mxu0 0.0
        %438 = vmatprep.subr.mxu0 0.0
        %439 = vmatpush1.msra.mxu0 0.0
        %440 = vmatprep.mubr.f32.mxu0 0.0
        %441 = vmatmul.mubr.f32.gmra.mrb[0].mxu0 %v365
        %v442 = vpop.f32.mrb[0].mxu0
        %v443 = vadd.f32 0.0, %v442
        %v444 = vpop.f32.mrb[0].mxu0
        %445 = vmatprep.mubr.f32.mxu0 0.0
        %446 = vmatmul.mubr.f32.gmra.mrb[0].mxu0 %v368
        %v447 = vpop.f32.mrb[0].mxu0
        %v448 = vadd.f32 0.0, %v447
        %v449 = vpop.f32.mrb[0].mxu0
        %450 = vmatprep.mubr.f32.mxu0 0.0
        %451 = vmatmul.mubr.f32.gmra.mrb[0].mxu0 %v371
        %v452 = vpop.f32.mrb[0].mxu0
        %v453 = vadd.f32 0.0, %v452
        %v454 = vpop.f32.mrb[0].mxu0
        %455 = vmatprep.mubr.f32.mxu0 0.0
        %456 = vmatmul.mubr.f32.gmra.mrb[0].mxu0 %v374
        %v457 = vpop.f32.mrb[0].mxu0
        %v458 = vadd.f32 0.0, %v457
        %v459 = vpop.f32.mrb[0].mxu0
        %460 = vdwg.mxu0
        %v462 = vsel %vm265, %v354, 0
        %v465 = vsel %vm265, %v355, 0
        %v468 = vsel %vm265, %v356, 0
        %v471 = vsel %vm265, %v357, 0
        %473 = vmatprep.subr.mxu0 0.0
        %474 = vmatpush1.msra.mxu0 %v362
        %475 = vmatprep.subr.mxu0 0.0
        %476 = vmatpush1.msra.mxu0 0.0
        %477 = vmatprep.subr.mxu0 0.0
        %478 = vmatpush1.msra.mxu0 0.0
        %479 = vmatprep.subr.mxu0 0.0
        %480 = vmatpush1.msra.mxu0 0.0
        %481 = vmatprep.subr.mxu0 0.0
        %482 = vmatpush1.msra.mxu0 0.0
        %483 = vmatprep.subr.mxu0 0.0
        %484 = vmatpush1.msra.mxu0 0.0
        %485 = vmatprep.subr.mxu0 0.0
        %486 = vmatpush1.msra.mxu0 0.0
        %487 = vmatprep.subr.mxu0 0.0
        %488 = vmatpush1.msra.mxu0 0.0
        %489 = vmatprep.subr.mxu0 0.0
        %490 = vmatpush1.msra.mxu0 0.0
        %491 = vmatprep.subr.mxu0 0.0
        %492 = vmatpush1.msra.mxu0 0.0
        %493 = vmatprep.subr.mxu0 0.0
        %494 = vmatpush1.msra.mxu0 0.0
        %495 = vmatprep.subr.mxu0 0.0
        %496 = vmatpush1.msra.mxu0 0.0
        %497 = vmatprep.subr.mxu0 0.0
        %498 = vmatpush1.msra.mxu0 0.0
        %499 = vmatprep.subr.mxu0 0.0
        %500 = vmatpush1.msra.mxu0 0.0
        %501 = vmatprep.subr.mxu0 0.0
        %502 = vmatpush1.msra.mxu0 0.0
        %503 = vmatprep.subr.mxu0 0.0
        %504 = vmatpush1.msra.mxu0 0.0
        %505 = vmatprep.subr.mxu0 0.0
        %506 = vmatpush1.msra.mxu0 0.0
        %507 = vmatprep.subr.mxu0 0.0
        %508 = vmatpush1.msra.mxu0 0.0
        %509 = vmatprep.subr.mxu0 0.0
        %510 = vmatpush1.msra.mxu0 0.0
        %511 = vmatprep.subr.mxu0 0.0
        %512 = vmatpush1.msra.mxu0 0.0
        %513 = vmatprep.subr.mxu0 0.0
        %514 = vmatpush1.msra.mxu0 0.0
        %515 = vmatprep.subr.mxu0 0.0
        %516 = vmatpush1.msra.mxu0 0.0
        %517 = vmatprep.subr.mxu0 0.0
        %518 = vmatpush1.msra.mxu0 0.0
        %519 = vmatprep.subr.mxu0 0.0
        %520 = vmatpush1.msra.mxu0 0.0
        %521 = vmatprep.subr.mxu0 0.0
        %522 = vmatpush1.msra.mxu0 0.0
        %523 = vmatprep.subr.mxu0 0.0
        %524 = vmatpush1.msra.mxu0 0.0
        %525 = vmatprep.subr.mxu0 0.0
        %526 = vmatpush1.msra.mxu0 0.0
        %527 = vmatprep.subr.mxu0 0.0
        %528 = vmatpush1.msra.mxu0 0.0
        %529 = vmatprep.subr.mxu0 0.0
        %530 = vmatpush1.msra.mxu0 0.0
        %531 = vmatprep.subr.mxu0 0.0
        %532 = vmatpush1.msra.mxu0 0.0
        %533 = vmatprep.subr.mxu0 0.0
        %534 = vmatpush1.msra.mxu0 0.0
        %535 = vmatprep.subr.mxu0 0.0
        %536 = vmatpush1.msra.mxu0 0.0
        %537 = vmatprep.mubr.f32.mxu0 0.0
        %538 = vmatmul.mubr.f32.gmra.mrb[0].mxu0 %v462
        %v539 = vpop.f32.mrb[0].mxu0
        %v540 = vadd.f32 %v443, %v539
        %v541 = vpop.f32.mrb[0].mxu0
        %542 = vmatprep.mubr.f32.mxu0 0.0
        %543 = vmatmul.mubr.f32.gmra.mrb[0].mxu0 %v465
        %v544 = vpop.f32.mrb[0].mxu0
        %v545 = vadd.f32 %v448, %v544
        %v546 = vpop.f32.mrb[0].mxu0
        %547 = vmatprep.mubr.f32.mxu0 0.0
        %548 = vmatmul.mubr.f32.gmra.mrb[0].mxu0 %v468
        %v549 = vpop.f32.mrb[0].mxu0
        %v550 = vadd.f32 %v453, %v549
        %v551 = vpop.f32.mrb[0].mxu0
        %552 = vmatprep.mubr.f32.mxu0 0.0
        %553 = vmatmul.mubr.f32.gmra.mrb[0].mxu0 %v471
        %v554 = vpop.f32.mrb[0].mxu0
        %v555 = vadd.f32 %v458, %v554
        %v556 = vpop.f32.mrb[0].mxu0
        %557 = vdwg.mxu0
        %v558 = vld [vmem:[#allocation8] sm:$0x1]
        %v560 = vlaneseq
        %v561 = vshrl.u32 %v560, 7
        %v562 = vsub.s32 0, %v561
        %v563 = vrot.slane %v558, %v562
        %v565 = vadd.f32 %v540, %v563
        %v566 = vadd.f32 %v545, %v563
        %v567 = vadd.f32 %v550, %v563
        %v568 = vadd.f32 %v555, %v563
        %569 = vst.msk [vmem:[%s254] sm:$0xff] %vm265, %v565
        %570 = vst.msk [vmem:[%s254 + $0x8] sm:$0xff] %vm265, %v566
        %571 = vst.msk [vmem:[%s254 + $0x10] sm:$0xff] %vm265, %v567
        %572 = vst.msk [vmem:[%s254 + $0x18] sm:$0xff] %vm265, %v568
        %s573 = sand.u32 %s120, 1
        %s574 = scalar_lea.sflag [#allocation4], %s573
        %s575 = sand.u32 %s120, 1
        %s576 = smul.addr %s575, 32
        %s577 = scalar_lea.vmem [#allocation10], %s576
        // Predicated region
        $region53: #{tpu_custom_call.1} parent=35 // pred_check
          %p578 = pneg %p130
        $region54: #{tpu_custom_call.1} parent=35 // pred_check_branch
          %580 = sbr.rel (%p578) target = $region56
        $region55: #{tpu_custom_call.1} parent=35 // pred_region
          %s581 = smul.u32 4, %s23
          %s583 = ssub.s32 512, 512
          %584 = vsyncadd %s574, %s583
          %s585 = smul.addr %s581, 128
          %s586 = scalar_lea.hbm %s4, %s585
          %s587 = sshll.u32 %s577, 4
          %s588 = int_to_ptr.vmem [resolvable:$true] %s587
          %593 = dma.vmem_to_hbm [thread:$0]  %s588, 512, %s586, %s574, 128, 128, 8
        $region56: #{tpu_custom_call.1} parent=35 // pred_fallthru
          _
      $region36: #{tpu_custom_call.1} parent=5 // pred_fallthru
        _
      %p594 = scmp.le.s32.totalorder 2, %s18
      // Predicated region
      $region57: #{tpu_custom_call.1} parent=5 // pred_check
        %p595 = pneg %p594
      $region58: #{tpu_custom_call.1} parent=5 // pred_check_branch
        %597 = sbr.rel (%p595) target = $region60
      $region59: #{tpu_custom_call.1} parent=5 // pred_region
        %s598 = ssub.s32 %s18, 2
        // Predicated region
        $region61: #{tpu_custom_call.1} parent=59 // pred_check
          %p599 = pneg %p136
        $region62: #{tpu_custom_call.1} parent=59 // pred_check_branch
          %601 = sbr.rel (%p599) target = $region64
        $region63: #{tpu_custom_call.1} parent=59 // pred_region
          %s602 = sand.u32 %s121, 1
          %s603 = scalar_lea.sflag [#allocation4], %s602
          %s604 = sand.u32 %s121, 1
          %s605 = smul.addr %s604, 32
          %s606 = scalar_lea.vmem [#allocation10], %s605
          %607 = dma.done %s603, 512
        $region64: #{tpu_custom_call.1} parent=59 // pred_fallthru
          _
      $region60: #{tpu_custom_call.1} parent=5 // pred_fallthru
        _
    $region6: #{tpu_custom_call.1} parent=1 // loop_footer
      %s22 = sadd.s32 1, %s18
    $region7: #{tpu_custom_call.1} parent=1 // loop_footer_branch
      %17 = sbr.rel target = $region3
    $region8: #{tpu_custom_call.1} parent=1 // loop_exit
      _
    %608 = vsyncpa [#allocation3], 1
    %s609 = scalar_lea.sflag [#allocation3], 1
    %610 = vsyncpa %s609, 1
    %611 = vsyncpa [#allocation6], 1
    %612 = vsyncpa [#allocation9], 1
    %613 = vsyncpa [#allocation4], 1
    %s614 = scalar_lea.sflag [#allocation4], 1
    %615 = vsyncpa %s614, 1

</llo_original>
